<compile_context>
chip_gen: v7x
topology: tpu7x:2x2x1
jax: 0.10.0
libtpu: 0.0.40
codegen_flags: <defaults>
</compile_context>

<pallas_src>
import jax
import jax.numpy as jnp
from jax import lax
from jax.experimental import pallas as pl
from jax.experimental.pallas import tpu as pltpu


def _round_up(x, m):
    return ((x + m - 1) // m) * m


def _vmem_capacity_bytes():
    try:
        return int(pltpu.get_tpu_info().vmem_capacity_bytes)
    except Exception:
        return 64 << 20  # conservative default (v7x per-core VMEM)


def _sublane_multiple(itemsize):
    return {4: 8, 2: 16, 1: 32}.get(int(itemsize), 8)


def _choose_tile_rows(B, row_align):
    """Pick the gather tile (rows/grid-step) minimizing padded work + overhead."""
    cands = {c for c in (128, 256, 512) if c % row_align == 0}
    cands.add(min(512, _round_up(B, row_align)))
    cands = [c for c in cands if c > 0 and c % row_align == 0]
    if not cands:
        cands = [_round_up(B, row_align)]

    def cost(t):
        padded = _round_up(B, t)
        steps = padded // t
        return padded + 64 * steps  # ~64 row-equivalents of per-step overhead

    return min(sorted(cands), key=cost)


# --------------------------------------------------------------------------
# Path A: VMEM-resident table, in-kernel row gather (no MXU, no N cap).
# --------------------------------------------------------------------------
def _make_resident_gather_kernel(tb, fold, d, unroll):
    rows_per_iter = fold * unroll

    def kernel(idx_ref, w_ref, out_ref):
        # idx_ref: (B_pad,) int32 batch indices in SMEM (scalar prefetch)
        # w_ref:   (N, D) embedding table, resident in VMEM
        # out_ref: (tb // fold, fold * D) lane-dense output tile
        base = pl.program_id(0) * tb

        def body(j, carry):
            for u in range(unroll):
                s = j * unroll + u                      # folded output row
                for c in range(fold):                   # lane slot within row
                    row = idx_ref[base + s * fold + c]
                    out_ref[pl.ds(s, 1), c * d:(c + 1) * d] = (
                        w_ref[pl.ds(row, 1), :])
            return carry

        lax.fori_loop(0, tb // rows_per_iter, body, None)

    return kernel


# --------------------------------------------------------------------------
# Path B: HBM-resident table, per-row DMAs with cross-step double buffering.
# --------------------------------------------------------------------------
def _make_dma_gather_kernel(rows_per_step):
    def kernel(idx_ref, w_hbm_ref, out_ref, land_ref, sem_ref):
        # idx_ref:   (B_pad,) int32 in SMEM (scalar prefetch)
        # w_hbm_ref: (N, D) embedding table, left in HBM (pl.ANY)
        # out_ref:   (R, D) output tile in VMEM
        # land_ref:  (2, R, D) persistent landing slab (double buffered)
        # sem_ref:   (2, R) DMA semaphores
        i = pl.program_id(0)
        nsteps = pl.num_programs(0)

        def issue(step, slot):
            base = step * rows_per_step
            for r in range(rows_per_step):
                row = idx_ref[base + r]
                pltpu.make_async_copy(
                    w_hbm_ref.at[pl.ds(row, 1), :],
                    land_ref.at[slot, pl.ds(r, 1), :],
                    sem_ref.at[slot, r],
                ).start()

        @pl.when(i == 0)
        def _():
            issue(0, 0)                       # prime the pipeline

        @pl.when(i + 1 < nsteps)
        def _():
            issue(i + 1, (i + 1) % 2)         # prefetch next step's rows

        slot = i % 2
        for r in range(rows_per_step):        # drain this step's rows
            pltpu.make_async_copy(
                w_hbm_ref.at[pl.ds(0, 1), :],           # shape/bytes only
                land_ref.at[slot, pl.ds(r, 1), :],
                sem_ref.at[slot, r],
            ).wait()
        out_ref[...] = land_ref[slot]

    return kernel


# --------------------------------------------------------------------------
# Wrapper: Traj2Vec.forward
# --------------------------------------------------------------------------
def traj2vec_forward(weight, batch=None, *, force_dma_path=False, tile_rows=None):
    """Equivalent of Traj2Vec.forward: returns weight, or weight[batch]."""
    if batch is None:
        # Identity on the embedding table; nothing to put in a kernel.
        return weight

    N, D = weight.shape
    batch = jnp.clip(batch.astype(jnp.int32), 0, N - 1)   # safe row gather
    (B,) = batch.shape
    itemsize = jnp.dtype(weight.dtype).itemsize
    sub = _sublane_multiple(itemsize)
    table_bytes = N * D * itemsize
    vmem_cap = _vmem_capacity_bytes()
    headroom = 8 << 20

    # Lane-folding factor so the output block's last dim is >= 128 lanes.
    fold = (128 // D) if (D < 128 and 128 % D == 0) else 1
    row_align = sub * fold

    if tile_rows is not None:
        tb = max(row_align, _round_up(int(tile_rows), row_align))
    else:
        tb = _choose_tile_rows(B, row_align)
    out_tile_bytes = tb * D * itemsize

    # Residency gate (raised from 0.2*cap): even if the pipeline ends up
    # double-buffering the table, 2*table + 2*out-tile + headroom must fit.
    use_resident = (not force_dma_path) and (
        2 * table_bytes + 2 * out_tile_bytes + headroom <= int(0.95 * vmem_cap))

    if use_resident:
        b_pad = _round_up(B, tb)
        idx = jnp.zeros((b_pad,), jnp.int32).at[:B].set(batch)
        unroll = max(1, 8 // fold)
        kernel = _make_resident_gather_kernel(tb, fold, D, unroll)
        out_rows = b_pad // fold
        blk_rows = tb // fold
        out_cols = fold * D
        vmem_limit = int(min(vmem_cap, 128 << 20,
                             max(32 << 20,
                                 2 * table_bytes + 4 * out_tile_bytes + headroom)))

        def call(single_buffer):
            tbl_kwargs = {}
            if single_buffer:
                # Constant index_map -> double-buffering the table is pure
                # VMEM waste; ask for a single buffer.
                tbl_kwargs["pipeline_mode"] = pl.Buffered(1)
            return pl.pallas_call(
                kernel,
                out_shape=jax.ShapeDtypeStruct((out_rows, out_cols), weight.dtype),
                grid_spec=pltpu.PrefetchScalarGridSpec(
                    num_scalar_prefetch=1,                 # indices -> SMEM
                    grid=(b_pad // tb,),
                    in_specs=[
                        pl.BlockSpec((N, D), lambda i, idx_ref: (0, 0),
                                     **tbl_kwargs),        # table, resident
                    ],
                    out_specs=pl.BlockSpec((blk_rows, out_cols),
                                           lambda i, idx_ref: (i, 0)),
                ),
                compiler_params=pltpu.CompilerParams(
                    dimension_semantics=("parallel",),
                    vmem_limit_bytes=vmem_limit),
            )(idx, weight)

        try:
            out = call(single_buffer=True)
        except Exception:
            # If the single-buffer request is rejected by this Pallas/Mosaic
            # version, fall back to the default (possibly double-buffered)
            # resident table; the budget above already accounts for it.
            out = call(single_buffer=False)
        return out.reshape(b_pad, D)[:B]

    # ---------------- Path B: multi-row HBM DMA gather -----------------
    row_bytes = max(D * itemsize, 1)
    rows = min(64, max(32, (32 << 10) // row_bytes))       # >=32 descriptors
    rows = _round_up(rows, sub)
    rows = max(sub, min(rows, _round_up(B, sub)))
    b_pad = _round_up(B, rows)
    idx = jnp.zeros((b_pad,), jnp.int32).at[:B].set(batch)

    out = pl.pallas_call(
        _make_dma_gather_kernel(rows),
        out_shape=jax.ShapeDtypeStruct((b_pad, D), weight.dtype),
        grid_spec=pltpu.PrefetchScalarGridSpec(
            num_scalar_prefetch=1,                         # indices -> SMEM
            grid=(b_pad // rows,),
            in_specs=[pl.BlockSpec(memory_space=pl.ANY)],  # table stays in HBM
            out_specs=pl.BlockSpec((rows, D), lambda i, idx_ref: (i, 0)),
            scratch_shapes=[
                pltpu.VMEM((2, rows, D), weight.dtype),
                pltpu.SemaphoreType.DMA((2, rows)),
            ],
        ),
        # "arbitrary": the cross-step prefetch carries DMA state between
        # consecutive grid steps, so they must run sequentially on one core.
        compiler_params=pltpu.CompilerParams(
            dimension_semantics=("arbitrary",)),
    )(idx, weight)
    return out[:B]


if __name__ == "__main__":
    key = jax.random.PRNGKey(0)
    k_w, k_b, k_w2, k_b2 = jax.random.split(key, 4)

    # Small config consistent with the module (nn.Embedding(N, embedding_dim)).
    N, D, B = 64, 32, 8
    weight = jax.random.normal(k_w, (N, D), dtype=jnp.float32)
    batch = jax.random.randint(k_b, (B,), 0, N, dtype=jnp.int32)
    ref = jnp.take(weight, batch, axis=0)      # emb.index_select(0, batch)

    # batch=None path (returns the full table; no kernel needed).
    full = jax.block_until_ready(traj2vec_forward(weight, None))
    assert full.shape == (N, D)

    # Fast path: VMEM-resident table, in-kernel row gather (lane-folded out).
    out_a = jax.block_until_ready(traj2vec_forward(weight, batch))
    assert out_a.shape == (B, D) and out_a.dtype == weight.dtype
    assert jnp.array_equal(out_a, ref), "resident gather mismatch vs reference"

    # Fallback path: HBM DMA gather (forced).
    out_b = jax.block_until_ready(
        traj2vec_forward(weight, batch, force_dma_path=True))
    assert out_b.shape == (B, D) and out_b.dtype == weight.dtype
    assert jnp.array_equal(out_b, ref), "DMA gather mismatch vs reference"

    # Larger batch: multi-tile resident path and multi-step DMA path
    # (exercises the cross-step double-buffered prefetch).
    N2, D2, B2 = 256, 32, 300
    weight2 = jax.random.normal(k_w2, (N2, D2), dtype=jnp.float32)
    batch2 = jax.random.randint(k_b2, (B2,), 0, N2, dtype=jnp.int32)
    ref2 = jnp.take(weight2, batch2, axis=0)

    out_a2 = jax.block_until_ready(
        traj2vec_forward(weight2, batch2, tile_rows=128))
    assert jnp.array_equal(out_a2, ref2), "multi-tile resident gather mismatch"

    out_b2 = jax.block_until_ready(
        traj2vec_forward(weight2, batch2, force_dma_path=True))
    assert jnp.array_equal(out_b2, ref2), "pipelined DMA gather mismatch"

    # TODO(synk): random-walk sampling / loader / loss are host-side data-prep
    # and training utilities, not part of forward(); not implemented as kernels.
    print("KERNEL_OK")
</pallas_src>

<mosaic_0001>
module attributes {stable_mosaic.version = 11 : i64} {
  func.func @kernel(%arg0: i32, %arg1: memref<32xi32, #tpu.memory_space<smem>>, %arg2: memref<64x32xf32, #tpu.memory_space<vmem>>, %arg3: memref<8x128xf32, #tpu.memory_space<vmem>>) attributes {dimension_semantics = [#tpu.dimension_semantics<parallel>], iteration_bounds = array<i64: 1>, scalar_prefetch = 1 : i64, scratch_operands = 0 : i64, tpu.core_type = #tpu.core_type<tc>, window_params = [{pipeline_mode = #tpu.pipeline_mode<synchronous>, transform_indices = @transform_0, window_bounds = array<i64: 64, 32>}, {transform_indices = @transform_1, window_bounds = array<i64: 8, 128>}]} {
    %c32_i32 = arith.constant 32 : i32
    %0 = arith.muli %arg0, %c32_i32 : i32
    %c0_i32 = arith.constant 0 : i32
    %c4_i32 = arith.constant 4 : i32
    %1 = arith.addi %c0_i32, %c4_i32 : i32
    %c1_i32 = arith.constant 1 : i32
    scf.for %arg4 = %c0_i32 to %1 step %c1_i32  : i32 {
      %c2_i32 = arith.constant 2 : i32
      %2 = arith.muli %arg4, %c2_i32 : i32
      %c0_i32_1 = arith.constant 0 : i32
      %3 = arith.addi %2, %c0_i32_1 : i32
      %c4_i32_2 = arith.constant 4 : i32
      %4 = arith.muli %3, %c4_i32_2 : i32
      %5 = arith.addi %0, %4 : i32
      %c0_i32_3 = arith.constant 0 : i32
      %6 = arith.addi %5, %c0_i32_3 : i32
      %7 = arith.index_cast %6 : i32 to index
      %8 = memref.load %arg1[%7] : memref<32xi32, #tpu.memory_space<smem>>
      %9 = arith.index_cast %8 : i32 to index
      %c0 = arith.constant 0 : index
      %10 = vector.load %arg2[%9, %c0] : memref<64x32xf32, #tpu.memory_space<vmem>>, vector<1x32xf32>
      %11 = arith.index_cast %3 : i32 to index
      %c0_4 = arith.constant 0 : index
      %12 = vector.load %arg3[%11, %c0_4] : memref<8x128xf32, #tpu.memory_space<vmem>>, vector<1x32xf32>
      tpu.vector_store %arg3[%11, %c0_4], %10 {strides = array<i32>} : memref<8x128xf32, #tpu.memory_space<vmem>>, vector<1x32xf32>,
      %c4_i32_5 = arith.constant 4 : i32
      %13 = arith.muli %3, %c4_i32_5 : i32
      %14 = arith.addi %0, %13 : i32
      %c1_i32_6 = arith.constant 1 : i32
      %15 = arith.addi %14, %c1_i32_6 : i32
      %16 = arith.index_cast %15 : i32 to index
      %17 = memref.load %arg1[%16] : memref<32xi32, #tpu.memory_space<smem>>
      %18 = arith.index_cast %17 : i32 to index
      %c0_7 = arith.constant 0 : index
      %19 = vector.load %arg2[%18, %c0_7] : memref<64x32xf32, #tpu.memory_space<vmem>>, vector<1x32xf32>
      %20 = arith.index_cast %3 : i32 to index
      %c32 = arith.constant 32 : index
      %21 = vector.load %arg3[%20, %c32] : memref<8x128xf32, #tpu.memory_space<vmem>>, vector<1x32xf32>
      tpu.vector_store %arg3[%20, %c32], %19 {strides = array<i32>} : memref<8x128xf32, #tpu.memory_space<vmem>>, vector<1x32xf32>,
      %c4_i32_8 = arith.constant 4 : i32
      %22 = arith.muli %3, %c4_i32_8 : i32
      %23 = arith.addi %0, %22 : i32
      %c2_i32_9 = arith.constant 2 : i32
      %24 = arith.addi %23, %c2_i32_9 : i32
      %25 = arith.index_cast %24 : i32 to index
      %26 = memref.load %arg1[%25] : memref<32xi32, #tpu.memory_space<smem>>
      %27 = arith.index_cast %26 : i32 to index
      %c0_10 = arith.constant 0 : index
      %28 = vector.load %arg2[%27, %c0_10] : memref<64x32xf32, #tpu.memory_space<vmem>>, vector<1x32xf32>
      %29 = arith.index_cast %3 : i32 to index
      %c64 = arith.constant 64 : index
      %30 = vector.load %arg3[%29, %c64] : memref<8x128xf32, #tpu.memory_space<vmem>>, vector<1x32xf32>
      tpu.vector_store %arg3[%29, %c64], %28 {strides = array<i32>} : memref<8x128xf32, #tpu.memory_space<vmem>>, vector<1x32xf32>,
      %c4_i32_11 = arith.constant 4 : i32
      %31 = arith.muli %3, %c4_i32_11 : i32
      %32 = arith.addi %0, %31 : i32
      %c3_i32 = arith.constant 3 : i32
      %33 = arith.addi %32, %c3_i32 : i32
      %34 = arith.index_cast %33 : i32 to index
      %35 = memref.load %arg1[%34] : memref<32xi32, #tpu.memory_space<smem>>
      %36 = arith.index_cast %35 : i32 to index
      %c0_12 = arith.constant 0 : index
      %37 = vector.load %arg2[%36, %c0_12] : memref<64x32xf32, #tpu.memory_space<vmem>>, vector<1x32xf32>
      %38 = arith.index_cast %3 : i32 to index
      %c96 = arith.constant 96 : index
      %39 = vector.load %arg3[%38, %c96] : memref<8x128xf32, #tpu.memory_space<vmem>>, vector<1x32xf32>
      tpu.vector_store %arg3[%38, %c96], %37 {strides = array<i32>} : memref<8x128xf32, #tpu.memory_space<vmem>>, vector<1x32xf32>,
      %c2_i32_13 = arith.constant 2 : i32
      %40 = arith.muli %arg4, %c2_i32_13 : i32
      %c1_i32_14 = arith.constant 1 : i32
      %41 = arith.addi %40, %c1_i32_14 : i32
      %c4_i32_15 = arith.constant 4 : i32
      %42 = arith.muli %41, %c4_i32_15 : i32
      %43 = arith.addi %0, %42 : i32
      %c0_i32_16 = arith.constant 0 : i32
      %44 = arith.addi %43, %c0_i32_16 : i32
      %45 = arith.index_cast %44 : i32 to index
      %46 = memref.load %arg1[%45] : memref<32xi32, #tpu.memory_space<smem>>
      %47 = arith.index_cast %46 : i32 to index
      %c0_17 = arith.constant 0 : index
      %48 = vector.load %arg2[%47, %c0_17] : memref<64x32xf32, #tpu.memory_space<vmem>>, vector<1x32xf32>
      %49 = arith.index_cast %41 : i32 to index
      %c0_18 = arith.constant 0 : index
      %50 = vector.load %arg3[%49, %c0_18] : memref<8x128xf32, #tpu.memory_space<vmem>>, vector<1x32xf32>
      tpu.vector_store %arg3[%49, %c0_18], %48 {strides = array<i32>} : memref<8x128xf32, #tpu.memory_space<vmem>>, vector<1x32xf32>,
      %c4_i32_19 = arith.constant 4 : i32
      %51 = arith.muli %41, %c4_i32_19 : i32
      %52 = arith.addi %0, %51 : i32
      %c1_i32_20 = arith.constant 1 : i32
      %53 = arith.addi %52, %c1_i32_20 : i32
      %54 = arith.index_cast %53 : i32 to index
      %55 = memref.load %arg1[%54] : memref<32xi32, #tpu.memory_space<smem>>
      %56 = arith.index_cast %55 : i32 to index
      %c0_21 = arith.constant 0 : index
      %57 = vector.load %arg2[%56, %c0_21] : memref<64x32xf32, #tpu.memory_space<vmem>>, vector<1x32xf32>
      %58 = arith.index_cast %41 : i32 to index
      %c32_22 = arith.constant 32 : index
      %59 = vector.load %arg3[%58, %c32_22] : memref<8x128xf32, #tpu.memory_space<vmem>>, vector<1x32xf32>
      tpu.vector_store %arg3[%58, %c32_22], %57 {strides = array<i32>} : memref<8x128xf32, #tpu.memory_space<vmem>>, vector<1x32xf32>,
      %c4_i32_23 = arith.constant 4 : i32
      %60 = arith.muli %41, %c4_i32_23 : i32
      %61 = arith.addi %0, %60 : i32
      %c2_i32_24 = arith.constant 2 : i32
      %62 = arith.addi %61, %c2_i32_24 : i32
      %63 = arith.index_cast %62 : i32 to index
      %64 = memref.load %arg1[%63] : memref<32xi32, #tpu.memory_space<smem>>
      %65 = arith.index_cast %64 : i32 to index
      %c0_25 = arith.constant 0 : index
      %66 = vector.load %arg2[%65, %c0_25] : memref<64x32xf32, #tpu.memory_space<vmem>>, vector<1x32xf32>
      %67 = arith.index_cast %41 : i32 to index
      %c64_26 = arith.constant 64 : index
      %68 = vector.load %arg3[%67, %c64_26] : memref<8x128xf32, #tpu.memory_space<vmem>>, vector<1x32xf32>
      tpu.vector_store %arg3[%67, %c64_26], %66 {strides = array<i32>} : memref<8x128xf32, #tpu.memory_space<vmem>>, vector<1x32xf32>,
      %c4_i32_27 = arith.constant 4 : i32
      %69 = arith.muli %41, %c4_i32_27 : i32
      %70 = arith.addi %0, %69 : i32
      %c3_i32_28 = arith.constant 3 : i32
      %71 = arith.addi %70, %c3_i32_28 : i32
      %72 = arith.index_cast %71 : i32 to index
      %73 = memref.load %arg1[%72] : memref<32xi32, #tpu.memory_space<smem>>
      %74 = arith.index_cast %73 : i32 to index
      %c0_29 = arith.constant 0 : index
      %75 = vector.load %arg2[%74, %c0_29] : memref<64x32xf32, #tpu.memory_space<vmem>>, vector<1x32xf32>
      %76 = arith.index_cast %41 : i32 to index
      %c96_30 = arith.constant 96 : index
      %77 = vector.load %arg3[%76, %c96_30] : memref<8x128xf32, #tpu.memory_space<vmem>>, vector<1x32xf32>
      tpu.vector_store %arg3[%76, %c96_30], %75 {strides = array<i32>} : memref<8x128xf32, #tpu.memory_space<vmem>>, vector<1x32xf32>,
    }
    %c4_i32_0 = arith.constant 4 : i32
    return
  }
  func.func @transform_0(%arg0: i32, %arg1: memref<32xi32, #tpu.memory_space<smem>>) -> (i32, i32) {
    %c0_i32 = arith.constant 0 : i32
    %c0_i32_0 = arith.constant 0 : i32
    %c0_i32_1 = arith.constant 0 : i32
    return %c0_i32, %c0_i32_0 : i32, i32
  }
  func.func @transform_1(%arg0: i32, %arg1: memref<32xi32, #tpu.memory_space<smem>>) -> (i32, i32) {
    %c0_i32 = arith.constant 0 : i32
    %c0_i32_0 = arith.constant 0 : i32
    return %arg0, %c0_i32 : i32, i32
  }
}

module attributes {stable_mosaic.version = 11 : i64} {
  func.func @kernel(%arg0: i32, %arg1: memref<32xi32, #tpu.memory_space<smem>>, %arg2: memref<64x32xf32, #tpu.memory_space<vmem>>, %arg3: memref<8x128xf32, #tpu.memory_space<vmem>>) attributes {dimension_semantics = [#tpu.dimension_semantics<parallel>], iteration_bounds = array<i64: 1>, scalar_prefetch = 1 : i64, scratch_operands = 0 : i64, tpu.core_type = #tpu.core_type<tc>, window_params = [{pipeline_mode = #tpu.pipeline_mode<synchronous>, transform_indices = @transform_0, window_bounds = array<i64: 64, 32>}, {transform_indices = @transform_1, window_bounds = array<i64: 8, 128>}]} {
    %c32_i32 = arith.constant 32 : i32
    %0 = arith.muli %arg0, %c32_i32 : i32
    %c0_i32 = arith.constant 0 : i32
    %c4_i32 = arith.constant 4 : i32
    %1 = arith.addi %c0_i32, %c4_i32 : i32
    %c1_i32 = arith.constant 1 : i32
    scf.for %arg4 = %c0_i32 to %1 step %c1_i32  : i32 {
      %c2_i32 = arith.constant 2 : i32
      %2 = arith.muli %arg4, %c2_i32 : i32
      %c0_i32_1 = arith.constant 0 : i32
      %3 = arith.addi %2, %c0_i32_1 : i32
      %c4_i32_2 = arith.constant 4 : i32
      %4 = arith.muli %3, %c4_i32_2 : i32
      %5 = arith.addi %0, %4 : i32
      %c0_i32_3 = arith.constant 0 : i32
      %6 = arith.addi %5, %c0_i32_3 : i32
      %7 = arith.index_cast %6 : i32 to index
      %8 = memref.load %arg1[%7] : memref<32xi32, #tpu.memory_space<smem>>
      %9 = arith.index_cast %8 : i32 to index
      %c0 = arith.constant 0 : index
      %10 = vector.load %arg2[%9, %c0] : memref<64x32xf32, #tpu.memory_space<vmem>>, vector<1x32xf32>
      %11 = arith.index_cast %3 : i32 to index
      %c0_4 = arith.constant 0 : index
      %12 = vector.load %arg3[%11, %c0_4] : memref<8x128xf32, #tpu.memory_space<vmem>>, vector<1x32xf32>
      tpu.vector_store %arg3[%11, %c0_4], %10 {strides = array<i32>} : memref<8x128xf32, #tpu.memory_space<vmem>>, vector<1x32xf32>,
      %c4_i32_5 = arith.constant 4 : i32
      %13 = arith.muli %3, %c4_i32_5 : i32
      %14 = arith.addi %0, %13 : i32
      %c1_i32_6 = arith.constant 1 : i32
      %15 = arith.addi %14, %c1_i32_6 : i32
      %16 = arith.index_cast %15 : i32 to index
      %17 = memref.load %arg1[%16] : memref<32xi32, #tpu.memory_space<smem>>
      %18 = arith.index_cast %17 : i32 to index
      %c0_7 = arith.constant 0 : index
      %19 = vector.load %arg2[%18, %c0_7] : memref<64x32xf32, #tpu.memory_space<vmem>>, vector<1x32xf32>
      %20 = arith.index_cast %3 : i32 to index
      %c32 = arith.constant 32 : index
      %21 = vector.load %arg3[%20, %c32] : memref<8x128xf32, #tpu.memory_space<vmem>>, vector<1x32xf32>
      tpu.vector_store %arg3[%20, %c32], %19 {strides = array<i32>} : memref<8x128xf32, #tpu.memory_space<vmem>>, vector<1x32xf32>,
      %c4_i32_8 = arith.constant 4 : i32
      %22 = arith.muli %3, %c4_i32_8 : i32
      %23 = arith.addi %0, %22 : i32
      %c2_i32_9 = arith.constant 2 : i32
      %24 = arith.addi %23, %c2_i32_9 : i32
      %25 = arith.index_cast %24 : i32 to index
      %26 = memref.load %arg1[%25] : memref<32xi32, #tpu.memory_space<smem>>
      %27 = arith.index_cast %26 : i32 to index
      %c0_10 = arith.constant 0 : index
      %28 = vector.load %arg2[%27, %c0_10] : memref<64x32xf32, #tpu.memory_space<vmem>>, vector<1x32xf32>
      %29 = arith.index_cast %3 : i32 to index
      %c64 = arith.constant 64 : index
      %30 = vector.load %arg3[%29, %c64] : memref<8x128xf32, #tpu.memory_space<vmem>>, vector<1x32xf32>
      tpu.vector_store %arg3[%29, %c64], %28 {strides = array<i32>} : memref<8x128xf32, #tpu.memory_space<vmem>>, vector<1x32xf32>,
      %c4_i32_11 = arith.constant 4 : i32
      %31 = arith.muli %3, %c4_i32_11 : i32
      %32 = arith.addi %0, %31 : i32
      %c3_i32 = arith.constant 3 : i32
      %33 = arith.addi %32, %c3_i32 : i32
      %34 = arith.index_cast %33 : i32 to index
      %35 = memref.load %arg1[%34] : memref<32xi32, #tpu.memory_space<smem>>
      %36 = arith.index_cast %35 : i32 to index
      %c0_12 = arith.constant 0 : index
      %37 = vector.load %arg2[%36, %c0_12] : memref<64x32xf32, #tpu.memory_space<vmem>>, vector<1x32xf32>
      %38 = arith.index_cast %3 : i32 to index
      %c96 = arith.constant 96 : index
      %39 = vector.load %arg3[%38, %c96] : memref<8x128xf32, #tpu.memory_space<vmem>>, vector<1x32xf32>
      tpu.vector_store %arg3[%38, %c96], %37 {strides = array<i32>} : memref<8x128xf32, #tpu.memory_space<vmem>>, vector<1x32xf32>,
      %c2_i32_13 = arith.constant 2 : i32
      %40 = arith.muli %arg4, %c2_i32_13 : i32
      %c1_i32_14 = arith.constant 1 : i32
      %41 = arith.addi %40, %c1_i32_14 : i32
      %c4_i32_15 = arith.constant 4 : i32
      %42 = arith.muli %41, %c4_i32_15 : i32
      %43 = arith.addi %0, %42 : i32
      %c0_i32_16 = arith.constant 0 : i32
      %44 = arith.addi %43, %c0_i32_16 : i32
      %45 = arith.index_cast %44 : i32 to index
      %46 = memref.load %arg1[%45] : memref<32xi32, #tpu.memory_space<smem>>
      %47 = arith.index_cast %46 : i32 to index
      %c0_17 = arith.constant 0 : index
      %48 = vector.load %arg2[%47, %c0_17] : memref<64x32xf32, #tpu.memory_space<vmem>>, vector<1x32xf32>
      %49 = arith.index_cast %41 : i32 to index
      %c0_18 = arith.constant 0 : index
      %50 = vector.load %arg3[%49, %c0_18] : memref<8x128xf32, #tpu.memory_space<vmem>>, vector<1x32xf32>
      tpu.vector_store %arg3[%49, %c0_18], %48 {strides = array<i32>} : memref<8x128xf32, #tpu.memory_space<vmem>>, vector<1x32xf32>,
      %c4_i32_19 = arith.constant 4 : i32
      %51 = arith.muli %41, %c4_i32_19 : i32
      %52 = arith.addi %0, %51 : i32
      %c1_i32_20 = arith.constant 1 : i32
      %53 = arith.addi %52, %c1_i32_20 : i32
      %54 = arith.index_cast %53 : i32 to index
      %55 = memref.load %arg1[%54] : memref<32xi32, #tpu.memory_space<smem>>
      %56 = arith.index_cast %55 : i32 to index
      %c0_21 = arith.constant 0 : index
      %57 = vector.load %arg2[%56, %c0_21] : memref<64x32xf32, #tpu.memory_space<vmem>>, vector<1x32xf32>
      %58 = arith.index_cast %41 : i32 to index
      %c32_22 = arith.constant 32 : index
      %59 = vector.load %arg3[%58, %c32_22] : memref<8x128xf32, #tpu.memory_space<vmem>>, vector<1x32xf32>
      tpu.vector_store %arg3[%58, %c32_22], %57 {strides = array<i32>} : memref<8x128xf32, #tpu.memory_space<vmem>>, vector<1x32xf32>,
      %c4_i32_23 = arith.constant 4 : i32
      %60 = arith.muli %41, %c4_i32_23 : i32
      %61 = arith.addi %0, %60 : i32
      %c2_i32_24 = arith.constant 2 : i32
      %62 = arith.addi %61, %c2_i32_24 : i32
      %63 = arith.index_cast %62 : i32 to index
      %64 = memref.load %arg1[%63] : memref<32xi32, #tpu.memory_space<smem>>
      %65 = arith.index_cast %64 : i32 to index
      %c0_25 = arith.constant 0 : index
      %66 = vector.load %arg2[%65, %c0_25] : memref<64x32xf32, #tpu.memory_space<vmem>>, vector<1x32xf32>
      %67 = arith.index_cast %41 : i32 to index
      %c64_26 = arith.constant 64 : index
      %68 = vector.load %arg3[%67, %c64_26] : memref<8x128xf32, #tpu.memory_space<vmem>>, vector<1x32xf32>
      tpu.vector_store %arg3[%67, %c64_26], %66 {strides = array<i32>} : memref<8x128xf32, #tpu.memory_space<vmem>>, vector<1x32xf32>,
      %c4_i32_27 = arith.constant 4 : i32
      %69 = arith.muli %41, %c4_i32_27 : i32
      %70 = arith.addi %0, %69 : i32
      %c3_i32_28 = arith.constant 3 : i32
      %71 = arith.addi %70, %c3_i32_28 : i32
      %72 = arith.index_cast %71 : i32 to index
      %73 = memref.load %arg1[%72] : memref<32xi32, #tpu.memory_space<smem>>
      %74 = arith.index_cast %73 : i32 to index
      %c0_29 = arith.constant 0 : index
      %75 = vector.load %arg2[%74, %c0_29] : memref<64x32xf32, #tpu.memory_space<vmem>>, vector<1x32xf32>
      %76 = arith.index_cast %41 : i32 to index
      %c96_30 = arith.constant 96 : index
      %77 = vector.load %arg3[%76, %c96_30] : memref<8x128xf32, #tpu.memory_space<vmem>>, vector<1x32xf32>
      tpu.vector_store %arg3[%76, %c96_30], %75 {strides = array<i32>} : memref<8x128xf32, #tpu.memory_space<vmem>>, vector<1x32xf32>,
    }
    %c4_i32_0 = arith.constant 4 : i32
    return
  }
  func.func @transform_0(%arg0: i32, %arg1: memref<32xi32, #tpu.memory_space<smem>>) -> (i32, i32) {
    %c0_i32 = arith.constant 0 : i32
    %c0_i32_0 = arith.constant 0 : i32
    %c0_i32_1 = arith.constant 0 : i32
    return %c0_i32, %c0_i32_0 : i32, i32
  }
  func.func @transform_1(%arg0: i32, %arg1: memref<32xi32, #tpu.memory_space<smem>>) -> (i32, i32) {
    %c0_i32 = arith.constant 0 : i32
    %c0_i32_0 = arith.constant 0 : i32
    return %arg0, %c0_i32 : i32, i32
  }
}

</mosaic_0001>

<llo_original>
// kernel: tpu_custom_call.1
$region0: #{tpu_custom_call.1}
  #allocation0 [shape = 'u32[]', space=smem, size = 0x4, offset = 0x4, fixed_abs, tag = 'smem constant byte address 0x4 - core index']
  #allocation1 [shape = 'u32[144,128]{1,0:T(1,128)}', space=vmem, size = 0x12000, scoped, tag = 'internal scratch']
  #allocation2 [shape = 's32[1]{0}', space=sflag, size = 0x4, scoped, tag = 'scoped memory for tpu_custom_call.1']
  #allocation3 [shape = 'u8[512]{0}', space=smem, size = 0x200, scoped, tag = 'prefetched SMEM operand 0']
  %s0 = inlined_call_operand.vmem [shape: s32[32], index: 0, kind: input, shape index: {}]
  %s1 = inlined_call_operand.vmem [shape: f32[64,32], index: 1, kind: input, shape index: {}]
  %s2 = inlined_call_operand.hbm [shape: f32[8,128], index: 2, kind: output, shape index: {}]
  %s3 = sld [smem:[#allocation0]]
  $region21: #{tpu_custom_call.1} parent=0
    _
  %s5 = ssub.s32 1, %s3
  %s6 = scalar_select 0, %s5, %s3
  %s7 = sshll.u32 %s0, 4
  %s8 = int_to_ptr.vmem [resolvable:$true] %s7
  %10 = dma.vmem_to_smem %s8, 16, [#allocation3], [#allocation2]
  %11 = dma.done [#allocation2], 16
  %12 = sfence
  $region1: #{tpu_custom_call.1} parent=0
    #allocation4 [shape = 'u8[4096]{0}', space=vmem, size = 0x1000, scoped, tag = 'output window, operand 0, single buffered']
    #allocation5 [shape = 's32[1]{0}', space=sflag, size = 0x4, scoped, tag = 'scoped memory for tpu_custom_call.1']
    %13 = vsyncpa [#allocation5], 0
    // Predicated region
    $region2: #{tpu_custom_call.1} parent=1 // pred_check
      _
    $region3: #{tpu_custom_call.1} parent=1 // pred_check_branch
      %15 = sbr.rel (0) target = $region5
    $region4: #{tpu_custom_call.1} parent=1 // pred_region
      _
    $region5: #{tpu_custom_call.1} parent=1 // pred_fallthru
      _
    %s16 = smul.u32 0, 32
    loop: start=0, step=1, limit=4
    $region6: #{tpu_custom_call.1} parent=1 // loop_pre_header
      _
    $region7: #{tpu_custom_call.1} parent=1 // loop_header
      %s18 = sphi 0, %s22
      %p19 = scmp.ge.s32.totalorder %s18, 4
    $region8: #{tpu_custom_call.1} parent=1 // loop_header_branch
      %21 = sbr.rel (%p19) target = $region12
    $region9: #{tpu_custom_call.1} parent=1 // loop_body
      %s23 = smul.u32 %s18, 2
      %s24 = smul.u32 %s18, 8
      %s25 = sadd.s32 %s16, %s24
      %s26 = sld [smem:[#allocation3 + %s25]]
      %s27 = scalar_lea.vmem %s1, %s26
      %v28 = vld [vmem:[%s27] sm:$0x1]
      %s29 = scalar_lea.vmem [#allocation4], %s23
      %vm30 = vcmask 253952
      %31 = vst.msk [vmem:[%s29] sm:$0x1] %vm30, %v28
      %s32 = sadd.s32 %s25, 1
      %s33 = sld [smem:[#allocation3 + %s32]]
      %s34 = scalar_lea.vmem %s1, %s33
      %v35 = vld [vmem:[%s34] sm:$0x1]
      %37 = vrot.lane.b32.xlu0 %v35, 32
      %v38 = vpop.permute.xlu0 %37
      %vm40 = vcmask 516352
      %41 = vst.msk [vmem:[%s29] sm:$0x1] %vm40, %v38
      %s42 = sadd.s32 %s25, 2
      %s43 = sld [smem:[#allocation3 + %s42]]
      %s44 = scalar_lea.vmem %s1, %s43
      %v45 = vld [vmem:[%s44] sm:$0x1]
      %47 = vrot.lane.b32.xlu0 %v45, 64
      %v48 = vpop.permute.xlu0 %47
      %vm50 = vcmask 778752
      %51 = vst.msk [vmem:[%s29] sm:$0x1] %vm50, %v48
      %s52 = sadd.s32 %s25, 3
      %s53 = sld [smem:[#allocation3 + %s52]]
      %s54 = scalar_lea.vmem %s1, %s53
      %v55 = vld [vmem:[%s54] sm:$0x1]
      %57 = vrot.lane.b32.xlu0 %v55, 96
      %v58 = vpop.permute.xlu0 %57
      %vm60 = vcmask 1041152
      %61 = vst.msk [vmem:[%s29] sm:$0x1] %vm60, %v58
      %s62 = sadd.s32 %s23, 1
      %s63 = smul.u32 %s62, 4
      %s64 = sadd.s32 %s16, %s63
      %s65 = sld [smem:[#allocation3 + %s64]]
      %s66 = scalar_lea.vmem %s1, %s65
      %v67 = vld [vmem:[%s66] sm:$0x1]
      %s68 = scalar_lea.vmem [#allocation4], %s62
      %69 = vst.msk [vmem:[%s68] sm:$0x1] %vm30, %v67
      %s70 = sadd.s32 %s64, 1
      %s71 = sld [smem:[#allocation3 + %s70]]
      %s72 = scalar_lea.vmem %s1, %s71
      %v73 = vld [vmem:[%s72] sm:$0x1]
      %75 = vrot.lane.b32.xlu0 %v73, 32
      %v76 = vpop.permute.xlu0 %75
      %78 = vst.msk [vmem:[%s68] sm:$0x1] %vm40, %v76
      %s79 = sadd.s32 %s64, 2
      %s80 = sld [smem:[#allocation3 + %s79]]
      %s81 = scalar_lea.vmem %s1, %s80
      %v82 = vld [vmem:[%s81] sm:$0x1]
      %84 = vrot.lane.b32.xlu0 %v82, 64
      %v85 = vpop.permute.xlu0 %84
      %87 = vst.msk [vmem:[%s68] sm:$0x1] %vm50, %v85
      %s88 = sadd.s32 %s64, 3
      %s89 = sld [smem:[#allocation3 + %s88]]
      %s90 = scalar_lea.vmem %s1, %s89
      %v91 = vld [vmem:[%s90] sm:$0x1]
      %93 = vrot.lane.b32.xlu0 %v91, 96
      %v94 = vpop.permute.xlu0 %93
      %96 = vst.msk [vmem:[%s68] sm:$0x1] %vm60, %v94
    $region10: #{tpu_custom_call.1} parent=1 // loop_footer
      %s22 = sadd.s32 1, %s18
    $region11: #{tpu_custom_call.1} parent=1 // loop_footer_branch
      %17 = sbr.rel target = $region7
    $region12: #{tpu_custom_call.1} parent=1 // loop_exit
      _
    // Predicated region
    $region13: #{tpu_custom_call.1} parent=1 // pred_check
      _
    $region14: #{tpu_custom_call.1} parent=1 // pred_check_branch
      %98 = sbr.rel (0) target = $region16
    $region15: #{tpu_custom_call.1} parent=1 // pred_region
      %s100 = ssub.s32 128, 128
      %101 = vsyncadd [#allocation5], %s100
      %s103 = sshll.u32 [#allocation4], 4
      %s104 = int_to_ptr.vmem [resolvable:$true] %s103
      %106 = dma.vmem_to_hbm [thread:$0]  %s104, 128, %s2, [#allocation5]
    $region16: #{tpu_custom_call.1} parent=1 // pred_fallthru
      _
    // Predicated region
    $region17: #{tpu_custom_call.1} parent=1 // pred_check
      _
    $region18: #{tpu_custom_call.1} parent=1 // pred_check_branch
      %108 = sbr.rel (0) target = $region20
    $region19: #{tpu_custom_call.1} parent=1 // pred_region
      %109 = dma.done [#allocation5], 128
    $region20: #{tpu_custom_call.1} parent=1 // pred_fallthru
      _
    %110 = vsyncpa [#allocation5], 1

// kernel: tpu_custom_call.1
$region0: #{tpu_custom_call.1}
  #allocation0 [shape = 'u32[]', space=smem, size = 0x4, offset = 0x4, fixed_abs, tag = 'smem constant byte address 0x4 - core index']
  #allocation1 [shape = 'u32[144,128]{1,0:T(1,128)}', space=vmem, size = 0x12000, scoped, tag = 'internal scratch']
  #allocation2 [shape = 's32[1]{0}', space=sflag, size = 0x4, scoped, tag = 'scoped memory for tpu_custom_call.1']
  #allocation3 [shape = 'u8[512]{0}', space=smem, size = 0x200, scoped, tag = 'prefetched SMEM operand 0']
  %s0 = inlined_call_operand.vmem [shape: s32[32], index: 0, kind: input, shape index: {}]
  %s1 = inlined_call_operand.vmem [shape: f32[64,32], index: 1, kind: input, shape index: {}]
  %s2 = inlined_call_operand.hbm [shape: f32[8,128], index: 2, kind: output, shape index: {}]
  %s3 = sld [smem:[#allocation0]]
  $region21: #{tpu_custom_call.1} parent=0
    _
  %s5 = ssub.s32 1, %s3
  %s6 = scalar_select 0, %s5, %s3
  %s7 = sshll.u32 %s0, 4
  %s8 = int_to_ptr.vmem [resolvable:$true] %s7
  %10 = dma.vmem_to_smem %s8, 16, [#allocation3], [#allocation2]
  %11 = dma.done [#allocation2], 16
  %12 = sfence
  $region1: #{tpu_custom_call.1} parent=0
    #allocation4 [shape = 'u8[4096]{0}', space=vmem, size = 0x1000, scoped, tag = 'output window, operand 0, single buffered']
    #allocation5 [shape = 's32[1]{0}', space=sflag, size = 0x4, scoped, tag = 'scoped memory for tpu_custom_call.1']
    %13 = vsyncpa [#allocation5], 0
    // Predicated region
    $region2: #{tpu_custom_call.1} parent=1 // pred_check
      _
    $region3: #{tpu_custom_call.1} parent=1 // pred_check_branch
      %15 = sbr.rel (0) target = $region5
    $region4: #{tpu_custom_call.1} parent=1 // pred_region
      _
    $region5: #{tpu_custom_call.1} parent=1 // pred_fallthru
      _
    %s16 = smul.u32 0, 32
    loop: start=0, step=1, limit=4
    $region6: #{tpu_custom_call.1} parent=1 // loop_pre_header
      _
    $region7: #{tpu_custom_call.1} parent=1 // loop_header
      %s18 = sphi 0, %s22
      %p19 = scmp.ge.s32.totalorder %s18, 4
    $region8: #{tpu_custom_call.1} parent=1 // loop_header_branch
      %21 = sbr.rel (%p19) target = $region12
    $region9: #{tpu_custom_call.1} parent=1 // loop_body
      %s23 = smul.u32 %s18, 2
      %s24 = smul.u32 %s18, 8
      %s25 = sadd.s32 %s16, %s24
      %s26 = sld [smem:[#allocation3 + %s25]]
      %s27 = scalar_lea.vmem %s1, %s26
      %v28 = vld [vmem:[%s27] sm:$0x1]
      %s29 = scalar_lea.vmem [#allocation4], %s23
      %vm30 = vcmask 253952
      %31 = vst.msk [vmem:[%s29] sm:$0x1] %vm30, %v28
      %s32 = sadd.s32 %s25, 1
      %s33 = sld [smem:[#allocation3 + %s32]]
      %s34 = scalar_lea.vmem %s1, %s33
      %v35 = vld [vmem:[%s34] sm:$0x1]
      %37 = vrot.lane.b32.xlu0 %v35, 32
      %v38 = vpop.permute.xlu0 %37
      %vm40 = vcmask 516352
      %41 = vst.msk [vmem:[%s29] sm:$0x1] %vm40, %v38
      %s42 = sadd.s32 %s25, 2
      %s43 = sld [smem:[#allocation3 + %s42]]
      %s44 = scalar_lea.vmem %s1, %s43
      %v45 = vld [vmem:[%s44] sm:$0x1]
      %47 = vrot.lane.b32.xlu0 %v45, 64
      %v48 = vpop.permute.xlu0 %47
      %vm50 = vcmask 778752
      %51 = vst.msk [vmem:[%s29] sm:$0x1] %vm50, %v48
      %s52 = sadd.s32 %s25, 3
      %s53 = sld [smem:[#allocation3 + %s52]]
      %s54 = scalar_lea.vmem %s1, %s53
      %v55 = vld [vmem:[%s54] sm:$0x1]
      %57 = vrot.lane.b32.xlu0 %v55, 96
      %v58 = vpop.permute.xlu0 %57
      %vm60 = vcmask 1041152
      %61 = vst.msk [vmem:[%s29] sm:$0x1] %vm60, %v58
      %s62 = sadd.s32 %s23, 1
      %s63 = smul.u32 %s62, 4
      %s64 = sadd.s32 %s16, %s63
      %s65 = sld [smem:[#allocation3 + %s64]]
      %s66 = scalar_lea.vmem %s1, %s65
      %v67 = vld [vmem:[%s66] sm:$0x1]
      %s68 = scalar_lea.vmem [#allocation4], %s62
      %69 = vst.msk [vmem:[%s68] sm:$0x1] %vm30, %v67
      %s70 = sadd.s32 %s64, 1
      %s71 = sld [smem:[#allocation3 + %s70]]
      %s72 = scalar_lea.vmem %s1, %s71
      %v73 = vld [vmem:[%s72] sm:$0x1]
      %75 = vrot.lane.b32.xlu0 %v73, 32
      %v76 = vpop.permute.xlu0 %75
      %78 = vst.msk [vmem:[%s68] sm:$0x1] %vm40, %v76
      %s79 = sadd.s32 %s64, 2
      %s80 = sld [smem:[#allocation3 + %s79]]
      %s81 = scalar_lea.vmem %s1, %s80
      %v82 = vld [vmem:[%s81] sm:$0x1]
      %84 = vrot.lane.b32.xlu0 %v82, 64
      %v85 = vpop.permute.xlu0 %84
      %87 = vst.msk [vmem:[%s68] sm:$0x1] %vm50, %v85
      %s88 = sadd.s32 %s64, 3
      %s89 = sld [smem:[#allocation3 + %s88]]
      %s90 = scalar_lea.vmem %s1, %s89
      %v91 = vld [vmem:[%s90] sm:$0x1]
      %93 = vrot.lane.b32.xlu0 %v91, 96
      %v94 = vpop.permute.xlu0 %93
      %96 = vst.msk [vmem:[%s68] sm:$0x1] %vm60, %v94
    $region10: #{tpu_custom_call.1} parent=1 // loop_footer
      %s22 = sadd.s32 1, %s18
    $region11: #{tpu_custom_call.1} parent=1 // loop_footer_branch
      %17 = sbr.rel target = $region7
    $region12: #{tpu_custom_call.1} parent=1 // loop_exit
      _
    // Predicated region
    $region13: #{tpu_custom_call.1} parent=1 // pred_check
      _
    $region14: #{tpu_custom_call.1} parent=1 // pred_check_branch
      %98 = sbr.rel (0) target = $region16
    $region15: #{tpu_custom_call.1} parent=1 // pred_region
      %s100 = ssub.s32 128, 128
      %101 = vsyncadd [#allocation5], %s100
      %s103 = sshll.u32 [#allocation4], 4
      %s104 = int_to_ptr.vmem [resolvable:$true] %s103
      %106 = dma.vmem_to_hbm [thread:$0]  %s104, 128, %s2, [#allocation5]
    $region16: #{tpu_custom_call.1} parent=1 // pred_fallthru
      _
    // Predicated region
    $region17: #{tpu_custom_call.1} parent=1 // pred_check
      _
    $region18: #{tpu_custom_call.1} parent=1 // pred_check_branch
      %108 = sbr.rel (0) target = $region20
    $region19: #{tpu_custom_call.1} parent=1 // pred_region
      %109 = dma.done [#allocation5], 128
    $region20: #{tpu_custom_call.1} parent=1 // pred_fallthru
      _
    %110 = vsyncpa [#allocation5], 1

</llo_original>
